<compile_context>
chip_gen: v7x
topology: tpu7x:2x2x1
jax: 0.10.0
libtpu: 0.0.40
codegen_flags: <defaults>
</compile_context>

<pallas_src>
import functools

import jax
import jax.numpy as jnp
from jax.experimental import pallas as pl
from jax.experimental.pallas import tpu as pltpu

LANE = 128            # lane width / padded feature width
INPUT_DIM = 96
HIDDEN_DIM = 64
OUTPUT_DIM = 3


def _round_up(x, m):
    return (x + m - 1) // m * m


# --------------------------------------------------------------------------- #
# Kernel
# --------------------------------------------------------------------------- #
def policy_kernel(x_ref, w_ref, o_ref):
    x = x_ref[...]                       # (TB, 128): [state | 1.0 | zero-pad]
    w1 = w_ref[0]                        # (128, 128): W1 + bias row + carry 1.0
    w2 = w_ref[1]                        # (128, 128): W2 + bias row + carry 1.0
    w3 = w_ref[2]                        # (128, 128): W3 + bias row

    # Biases ride through the MXU via the augmented-1 channel; padded columns
    # of the slab are zero so extra lanes stay exactly 0 (ReLU keeps them 0,
    # the carry channel stays exactly 1).
    h1 = jnp.maximum(jnp.dot(x, w1, preferred_element_type=jnp.float32), 0.0)
    h2 = jnp.maximum(jnp.dot(h1, w2, preferred_element_type=jnp.float32), 0.0)
    logits = jnp.dot(h2, w3, preferred_element_type=jnp.float32)   # (TB, 128)

    # Only the first OUTPUT_DIM lanes are real logits -> clamp the rest to a
    # large finite negative (exp underflows to exactly 0, no inf/NaN paths).
    lane_idx = jax.lax.broadcasted_iota(jnp.int32, logits.shape, 1)
    logits = jnp.where(lane_idx < OUTPUT_DIM, logits, jnp.float32(-1e30))

    # Numerically stable softmax with EXACT normalization (one f32 divide per
    # row on a (TB, 1) vector, then a broadcast multiply).
    m = jnp.max(logits, axis=-1, keepdims=True)
    e = jnp.exp(logits - m)                       # padded lanes -> exactly 0
    s = jnp.sum(e, axis=-1, keepdims=True)
    o_ref[...] = e * (jnp.float32(1.0) / s)


# --------------------------------------------------------------------------- #
# Wrapper
# --------------------------------------------------------------------------- #
@functools.partial(jax.jit, static_argnames=("block_b",))
def _policy_forward_2d(state, w_slab, *, block_b=256):
    B, in_dim = state.shape
    assert in_dim + 1 <= LANE and w_slab.shape == (3, LANE, LANE)

    tb = min(block_b, _round_up(B, 8))            # batch tile (multiple of 8)
    padded_b = _round_up(B, tb)

    # Augment + pad activations: [state, 1.0, zeros] -> (padded_B, 128).
    x_aug = jnp.zeros((padded_b, LANE), jnp.float32)
    x_aug = x_aug.at[:B, :in_dim].set(state.astype(jnp.float32))
    x_aug = x_aug.at[:B, in_dim].set(1.0)

    out = pl.pallas_call(
        policy_kernel,
        out_shape=jax.ShapeDtypeStruct((padded_b, LANE), jnp.float32),
        grid_spec=pltpu.PrefetchScalarGridSpec(
            num_scalar_prefetch=0,
            grid=(padded_b // tb,),
            in_specs=[
                pl.BlockSpec((tb, LANE), lambda i: (i, 0)),
                # Whole slab, same block every step -> single DMA, VMEM-resident.
                pl.BlockSpec((3, LANE, LANE), lambda i: (0, 0, 0)),
            ],
            out_specs=pl.BlockSpec((tb, LANE), lambda i: (i, 0)),
        ),
        compiler_params=pltpu.CompilerParams(
            dimension_semantics=("parallel",)),   # shard batch blocks across TCs
    )(x_aug, w_slab)

    return out[:B, :OUTPUT_DIM]


def policy_network_forward(state, w_slab, *, block_b=256):
    """state: (B, INPUT_DIM) or (INPUT_DIM,) f32; w_slab: packed (3,128,128).

    Returns (B, OUTPUT_DIM) (or (OUTPUT_DIM,)) action probabilities.
    """
    squeeze = state.ndim == 1
    if squeeze:
        state = state[None, :]
    probs = _policy_forward_2d(state, w_slab, block_b=block_b)
    return probs[0] if squeeze else probs


# --------------------------------------------------------------------------- #
# Parameter construction (matches PyTorch nn.Linear default init scale)
# --------------------------------------------------------------------------- #
def init_params(key, input_dim=INPUT_DIM, hidden_dim=HIDDEN_DIM, output_dim=OUTPUT_DIM):
    ks = jax.random.split(key, 6)

    def linear(kw, kb, fan_in, fan_out):
        bound = 1.0 / jnp.sqrt(fan_in)
        w = jax.random.uniform(kw, (fan_in, fan_out), jnp.float32, -bound, bound)
        b = jax.random.uniform(kb, (fan_out,), jnp.float32, -bound, bound)
        return w, b

    return (linear(ks[0], ks[1], input_dim, hidden_dim),
            linear(ks[2], ks[3], hidden_dim, hidden_dim),
            linear(ks[4], ks[5], hidden_dim, output_dim))


def pack_params(params, input_dim=INPUT_DIM, hidden_dim=HIDDEN_DIM, output_dim=OUTPUT_DIM):
    """Pack (W, b) x 3 into one (3, 128, 128) slab with biases folded in."""
    (w1, b1), (w2, b2), (w3, b3) = params

    blk1 = jnp.zeros((LANE, LANE), jnp.float32)
    blk1 = blk1.at[:input_dim, :hidden_dim].set(w1)
    blk1 = blk1.at[input_dim, :hidden_dim].set(b1)       # bias row (hit by x's 1-col)
    blk1 = blk1.at[input_dim, hidden_dim].set(1.0)       # carry the 1 to layer 2

    blk2 = jnp.zeros((LANE, LANE), jnp.float32)
    blk2 = blk2.at[:hidden_dim, :hidden_dim].set(w2)
    blk2 = blk2.at[hidden_dim, :hidden_dim].set(b2)
    blk2 = blk2.at[hidden_dim, hidden_dim].set(1.0)      # carry the 1 to layer 3

    blk3 = jnp.zeros((LANE, LANE), jnp.float32)
    blk3 = blk3.at[:hidden_dim, :output_dim].set(w3)
    blk3 = blk3.at[hidden_dim, :output_dim].set(b3)

    return jnp.stack([blk1, blk2, blk3], axis=0)


def policy_ref(state, params):
    """Pure-JAX reference (mirrors the PyTorch module), full precision."""
    (w1, b1), (w2, b2), (w3, b3) = params
    dot = lambda a, b: jnp.dot(a, b, precision=jax.lax.Precision.HIGHEST)
    h1 = jax.nn.relu(dot(state, w1) + b1)
    h2 = jax.nn.relu(dot(h1, w2) + b2)
    return jax.nn.softmax(dot(h2, w3) + b3, axis=-1)


# --------------------------------------------------------------------------- #
if __name__ == "__main__":
    key = jax.random.PRNGKey(0)
    k_param, k_state = jax.random.split(key)

    params = init_params(k_param)
    w_slab = pack_params(params)

    # Typical small per-step policy query (single batch tile).
    state = jax.random.normal(k_state, (2, INPUT_DIM), dtype=jnp.float32)
    probs = jax.block_until_ready(policy_network_forward(state, w_slab))
    ref = policy_ref(state, params)
    assert probs.shape == (2, OUTPUT_DIM)
    assert bool(jnp.all(jnp.isfinite(probs)))
    assert jnp.allclose(jnp.sum(probs, axis=-1), 1.0, atol=2e-3)
    assert jnp.allclose(probs, ref, atol=3e-3, rtol=3e-3)

    # 1-D state (matches the module's "single state vector" usage).
    probs_1d = jax.block_until_ready(policy_network_forward(state[0], w_slab))
    assert probs_1d.shape == (OUTPUT_DIM,)
    assert jnp.allclose(probs_1d, ref[0], atol=3e-3, rtol=3e-3)

    # Batched path exercising the multi-tile grid + batch padding.
    state_big = jax.random.normal(jax.random.PRNGKey(1), (40, INPUT_DIM), jnp.float32)
    probs_big = jax.block_until_ready(
        policy_network_forward(state_big, w_slab, block_b=16))
    ref_big = policy_ref(state_big, params)
    assert probs_big.shape == (40, OUTPUT_DIM)
    assert bool(jnp.all(jnp.isfinite(probs_big)))
    assert jnp.allclose(jnp.sum(probs_big, axis=-1), 1.0, atol=2e-3)
    assert jnp.allclose(probs_big, ref_big, atol=3e-3, rtol=3e-3)

    print("KERNEL_OK")
</pallas_src>

<mosaic_0001>
module attributes {stable_mosaic.version = 11 : i64} {
  func.func @policy_kernel(%arg0: i32, %arg1: memref<8x128xf32, #tpu.memory_space<vmem>>, %arg2: memref<3x128x128xf32, #tpu.memory_space<vmem>>, %arg3: memref<8x128xf32, #tpu.memory_space<vmem>>) attributes {dimension_semantics = [#tpu.dimension_semantics<parallel>], iteration_bounds = array<i64: 1>, scalar_prefetch = 0 : i64, scratch_operands = 0 : i64, tpu.core_type = #tpu.core_type<tc>, window_params = [{transform_indices = @transform_0, window_bounds = array<i64: 8, 128>}, {pipeline_mode = #tpu.pipeline_mode<synchronous>, transform_indices = @transform_1, window_bounds = array<i64: 3, 128, 128>}, {transform_indices = @transform_2, window_bounds = array<i64: 8, 128>}]} {
    %c0 = arith.constant 0 : index
    %c0_0 = arith.constant 0 : index
    %0 = vector.load %arg1[%c0, %c0_0] : memref<8x128xf32, #tpu.memory_space<vmem>>, vector<8x128xf32>
    %c0_1 = arith.constant 0 : index
    %c0_2 = arith.constant 0 : index
    %c0_3 = arith.constant 0 : index
    %1 = vector.load %arg2[%c0_1, %c0_2, %c0_3] : memref<3x128x128xf32, #tpu.memory_space<vmem>>, vector<1x128x128xf32>
    %2 = vector.shape_cast %1 : vector<1x128x128xf32> to vector<128x128xf32>
    %c1 = arith.constant 1 : index
    %c0_4 = arith.constant 0 : index
    %c0_5 = arith.constant 0 : index
    %3 = vector.load %arg2[%c1, %c0_4, %c0_5] : memref<3x128x128xf32, #tpu.memory_space<vmem>>, vector<1x128x128xf32>
    %4 = vector.shape_cast %3 : vector<1x128x128xf32> to vector<128x128xf32>
    %c2 = arith.constant 2 : index
    %c0_6 = arith.constant 0 : index
    %c0_7 = arith.constant 0 : index
    %5 = vector.load %arg2[%c2, %c0_6, %c0_7] : memref<3x128x128xf32, #tpu.memory_space<vmem>>, vector<1x128x128xf32>
    %6 = vector.shape_cast %5 : vector<1x128x128xf32> to vector<128x128xf32>
    %cst = arith.constant dense<0.000000e+00> : vector<8x128xf32>
    %7 = tpu.matmul %0, %2, %cst {dimension_numbers = #tpu.dot_dimension_numbers<[1], [0], [0], [1], [0, 0, 1, 1], [], []>} : vector<8x128xf32>, vector<128x128xf32>, vector<8x128xf32> -> vector<8x128xf32>
    %cst_8 = arith.constant 0.000000e+00 : f32
    %8 = vector.broadcast %cst_8 : f32 to vector<8x128xf32>
    %9 = arith.maximumf %7, %8 : vector<8x128xf32>
    %cst_9 = arith.constant dense<0.000000e+00> : vector<8x128xf32>
    %10 = tpu.matmul %9, %4, %cst_9 {dimension_numbers = #tpu.dot_dimension_numbers<[1], [0], [0], [1], [0, 0, 1, 1], [], []>} : vector<8x128xf32>, vector<128x128xf32>, vector<8x128xf32> -> vector<8x128xf32>
    %cst_10 = arith.constant 0.000000e+00 : f32
    %11 = vector.broadcast %cst_10 : f32 to vector<8x128xf32>
    %12 = arith.maximumf %10, %11 : vector<8x128xf32>
    %cst_11 = arith.constant dense<0.000000e+00> : vector<8x128xf32>
    %13 = tpu.matmul %12, %6, %cst_11 {dimension_numbers = #tpu.dot_dimension_numbers<[1], [0], [0], [1], [0, 0, 1, 1], [], []>} : vector<8x128xf32>, vector<128x128xf32>, vector<8x128xf32> -> vector<8x128xf32>
    %14 = tpu.iota {dimensions = array<i32: 1>} : vector<8x128xi32>
    %c3_i32 = arith.constant 3 : i32
    %15 = vector.broadcast %c3_i32 : i32 to vector<8x128xi32>
    %16 = arith.cmpi slt, %14, %15 : vector<8x128xi32>
    %cst_12 = arith.constant -1.000000e+30 : f32
    %17 = vector.broadcast %cst_12 : f32 to vector<8x128xf32>
    %18 = arith.select %16, %13, %17 : vector<8x128xi1>, vector<8x128xf32>
    %cst_13 = arith.constant dense<0xFF800000> : vector<8xf32>
    %19 = vector.multi_reduction <maximumf>, %18, %cst_13 [1] : vector<8x128xf32> to vector<8xf32>
    %20 = vector.shape_cast %19 : vector<8xf32> to vector<8x1xf32>
    %21 = vector.broadcast %20 : vector<8x1xf32> to vector<8x128xf32>
    %22 = arith.subf %18, %21 : vector<8x128xf32>
    %23 = math.exp %22 : vector<8x128xf32>
    %cst_14 = arith.constant dense<0.000000e+00> : vector<8xf32>
    %24 = vector.multi_reduction <add>, %23, %cst_14 [1] : vector<8x128xf32> to vector<8xf32>
    %25 = vector.shape_cast %24 : vector<8xf32> to vector<8x1xf32>
    %cst_15 = arith.constant 1.000000e+00 : f32
    %26 = vector.broadcast %cst_15 : f32 to vector<8x1xf32>
    %27 = arith.divf %26, %25 : vector<8x1xf32>
    %28 = vector.broadcast %27 : vector<8x1xf32> to vector<8x128xf32>
    %29 = arith.mulf %23, %28 : vector<8x128xf32>
    %c0_16 = arith.constant 0 : index
    %c0_17 = arith.constant 0 : index
    %30 = vector.load %arg3[%c0_16, %c0_17] : memref<8x128xf32, #tpu.memory_space<vmem>>, vector<8x128xf32>
    tpu.vector_store %arg3[%c0_16, %c0_17], %29 {strides = array<i32>} : memref<8x128xf32, #tpu.memory_space<vmem>>, vector<8x128xf32>,
    return
  }
  func.func @transform_0(%arg0: i32) -> (i32, i32) {
    %c0_i32 = arith.constant 0 : i32
    %c0_i32_0 = arith.constant 0 : i32
    return %arg0, %c0_i32 : i32, i32
  }
  func.func @transform_1(%arg0: i32) -> (i32, i32, i32) {
    %c0_i32 = arith.constant 0 : i32
    %c0_i32_0 = arith.constant 0 : i32
    %c0_i32_1 = arith.constant 0 : i32
    %c0_i32_2 = arith.constant 0 : i32
    return %c0_i32, %c0_i32_0, %c0_i32_1 : i32, i32, i32
  }
  func.func @transform_2(%arg0: i32) -> (i32, i32) {
    %c0_i32 = arith.constant 0 : i32
    %c0_i32_0 = arith.constant 0 : i32
    return %arg0, %c0_i32 : i32, i32
  }
}

</mosaic_0001>

<llo_original>
// kernel: _policy_forward_2d.1
$region0: #{_policy_forward_2d.1}
  #allocation0 [shape = 'u32[]', space=smem, size = 0x4, offset = 0x4, fixed_abs, tag = 'smem constant byte address 0x4 - core index']
  #allocation1 [shape = 'u32[144,128]{1,0:T(1,128)}', space=vmem, size = 0x12000, scoped, tag = 'internal scratch']
  %s0 = inlined_call_operand.vmem [shape: f32[8,128], index: 0, kind: input, shape index: {}]
  %s1 = inlined_call_operand.hbm [shape: f32[3,128,128], index: 1, kind: input, shape index: {}]
  %s2 = inlined_call_operand.vmem [shape: f32[8,128], index: 2, kind: output, shape index: {}]
  %s3 = sld [smem:[#allocation0]]
  $region22: #{_policy_forward_2d.1} parent=0
    _
  %s5 = ssub.s32 1, %s3
  %s6 = scalar_select 0, %s5, %s3
  $region1: #{_policy_forward_2d.1} parent=0
    #allocation2 [shape = 'u8[196608]{0}', space=vmem, size = 0x30000, scoped, tag = 'input window, operand 1, single buffered']
    #allocation3 [shape = 's32[1]{0}', space=sflag, size = 0x4, scoped, tag = 'scoped memory for _policy_forward_2d.1']
    %7 = vsyncpa [#allocation3], 0
    // Predicated region
    $region2: #{_policy_forward_2d.1} parent=1 // pred_check
      _
    $region3: #{_policy_forward_2d.1} parent=1 // pred_check_branch
      %9 = sbr.rel (0) target = $region5
    $region4: #{_policy_forward_2d.1} parent=1 // pred_region
      _
    $region5: #{_policy_forward_2d.1} parent=1 // pred_fallthru
      _
    // Predicated region
    $region6: #{_policy_forward_2d.1} parent=1 // pred_check
      _
    $region7: #{_policy_forward_2d.1} parent=1 // pred_check_branch
      %11 = sbr.rel (0) target = $region9
    $region8: #{_policy_forward_2d.1} parent=1 // pred_region
      %s13 = ssub.s32 6144, 6144
      %14 = vsyncadd [#allocation3], %s13
      %s15 = sshll.u32 [#allocation2], 4
      %s16 = int_to_ptr.vmem [resolvable:$true] %s15
      %21 = dma.hbm_to_vmem [thread:$0]  %s1, 6144, %s16, [#allocation3], 128, 128, 8
    $region9: #{_policy_forward_2d.1} parent=1 // pred_fallthru
      _
    // Predicated region
    $region10: #{_policy_forward_2d.1} parent=1 // pred_check
      _
    $region11: #{_policy_forward_2d.1} parent=1 // pred_check_branch
      %23 = sbr.rel (0) target = $region13
    $region12: #{_policy_forward_2d.1} parent=1 // pred_region
      %24 = dma.done [#allocation3], 6144
    $region13: #{_policy_forward_2d.1} parent=1 // pred_fallthru
      _
    %v25 = vld [vmem:[%s0] sm:$0xff]
    %v26 = vld [vmem:[#allocation2] sm:$0xff]
    %v27 = vld [vmem:[#allocation2 + $0x8] sm:$0xff]
    %v28 = vld [vmem:[#allocation2 + $0x10] sm:$0xff]
    %v29 = vld [vmem:[#allocation2 + $0x18] sm:$0xff]
    %v30 = vld [vmem:[#allocation2 + $0x20] sm:$0xff]
    %v31 = vld [vmem:[#allocation2 + $0x28] sm:$0xff]
    %v32 = vld [vmem:[#allocation2 + $0x30] sm:$0xff]
    %v33 = vld [vmem:[#allocation2 + $0x38] sm:$0xff]
    %v34 = vld [vmem:[#allocation2 + $0x40] sm:$0xff]
    %v35 = vld [vmem:[#allocation2 + $0x48] sm:$0xff]
    %v36 = vld [vmem:[#allocation2 + $0x50] sm:$0xff]
    %v37 = vld [vmem:[#allocation2 + $0x58] sm:$0xff]
    %v38 = vld [vmem:[#allocation2 + $0x60] sm:$0xff]
    %v39 = vld [vmem:[#allocation2 + $0x68] sm:$0xff]
    %v40 = vld [vmem:[#allocation2 + $0x70] sm:$0xff]
    %v41 = vld [vmem:[#allocation2 + $0x78] sm:$0xff]
    %s42 = scalar_lea.vmem [#allocation2], 128
    %v43 = vld [vmem:[%s42] sm:$0xff]
    %v44 = vld [vmem:[%s42 + $0x8] sm:$0xff]
    %v45 = vld [vmem:[%s42 + $0x10] sm:$0xff]
    %v46 = vld [vmem:[%s42 + $0x18] sm:$0xff]
    %v47 = vld [vmem:[%s42 + $0x20] sm:$0xff]
    %v48 = vld [vmem:[%s42 + $0x28] sm:$0xff]
    %v49 = vld [vmem:[%s42 + $0x30] sm:$0xff]
    %v50 = vld [vmem:[%s42 + $0x38] sm:$0xff]
    %v51 = vld [vmem:[%s42 + $0x40] sm:$0xff]
    %v52 = vld [vmem:[%s42 + $0x48] sm:$0xff]
    %v53 = vld [vmem:[%s42 + $0x50] sm:$0xff]
    %v54 = vld [vmem:[%s42 + $0x58] sm:$0xff]
    %v55 = vld [vmem:[%s42 + $0x60] sm:$0xff]
    %v56 = vld [vmem:[%s42 + $0x68] sm:$0xff]
    %v57 = vld [vmem:[%s42 + $0x70] sm:$0xff]
    %v58 = vld [vmem:[%s42 + $0x78] sm:$0xff]
    %s59 = scalar_lea.vmem [#allocation2], 256
    %v60 = vld [vmem:[%s59] sm:$0xff]
    %v61 = vld [vmem:[%s59 + $0x8] sm:$0xff]
    %v62 = vld [vmem:[%s59 + $0x10] sm:$0xff]
    %v63 = vld [vmem:[%s59 + $0x18] sm:$0xff]
    %v64 = vld [vmem:[%s59 + $0x20] sm:$0xff]
    %v65 = vld [vmem:[%s59 + $0x28] sm:$0xff]
    %v66 = vld [vmem:[%s59 + $0x30] sm:$0xff]
    %v67 = vld [vmem:[%s59 + $0x38] sm:$0xff]
    %v68 = vld [vmem:[%s59 + $0x40] sm:$0xff]
    %v69 = vld [vmem:[%s59 + $0x48] sm:$0xff]
    %v70 = vld [vmem:[%s59 + $0x50] sm:$0xff]
    %v71 = vld [vmem:[%s59 + $0x58] sm:$0xff]
    %v72 = vld [vmem:[%s59 + $0x60] sm:$0xff]
    %v73 = vld [vmem:[%s59 + $0x68] sm:$0xff]
    %v74 = vld [vmem:[%s59 + $0x70] sm:$0xff]
    %v75 = vld [vmem:[%s59 + $0x78] sm:$0xff]
    %76 = vmatprep.subr.mxu0 0.0
    %77 = vmatpush1.msra.mxu0 %v26
    %78 = vmatprep.subr.mxu0 0.0
    %79 = vmatpush1.msra.mxu0 %v27
    %80 = vmatprep.subr.mxu0 0.0
    %81 = vmatpush1.msra.mxu0 %v28
    %82 = vmatprep.subr.mxu0 0.0
    %83 = vmatpush1.msra.mxu0 %v29
    %84 = vmatprep.subr.mxu0 0.0
    %85 = vmatpush1.msra.mxu0 %v30
    %86 = vmatprep.subr.mxu0 0.0
    %87 = vmatpush1.msra.mxu0 %v31
    %88 = vmatprep.subr.mxu0 0.0
    %89 = vmatpush1.msra.mxu0 %v32
    %90 = vmatprep.subr.mxu0 0.0
    %91 = vmatpush1.msra.mxu0 %v33
    %92 = vmatprep.subr.mxu0 0.0
    %93 = vmatpush1.msra.mxu0 %v34
    %94 = vmatprep.subr.mxu0 0.0
    %95 = vmatpush1.msra.mxu0 %v35
    %96 = vmatprep.subr.mxu0 0.0
    %97 = vmatpush1.msra.mxu0 %v36
    %98 = vmatprep.subr.mxu0 0.0
    %99 = vmatpush1.msra.mxu0 %v37
    %100 = vmatprep.subr.mxu0 0.0
    %101 = vmatpush1.msra.mxu0 %v38
    %102 = vmatprep.subr.mxu0 0.0
    %103 = vmatpush1.msra.mxu0 %v39
    %104 = vmatprep.subr.mxu0 0.0
    %105 = vmatpush1.msra.mxu0 %v40
    %106 = vmatprep.subr.mxu0 0.0
    %107 = vmatpush1.msra.mxu0 %v41
    %108 = vmatprep.subr.mxu0 0.0
    %109 = vmatpush1.msra.mxu0 0.0
    %110 = vmatprep.subr.mxu0 0.0
    %111 = vmatpush1.msra.mxu0 0.0
    %112 = vmatprep.subr.mxu0 0.0
    %113 = vmatpush1.msra.mxu0 0.0
    %114 = vmatprep.subr.mxu0 0.0
    %115 = vmatpush1.msra.mxu0 0.0
    %116 = vmatprep.subr.mxu0 0.0
    %117 = vmatpush1.msra.mxu0 0.0
    %118 = vmatprep.subr.mxu0 0.0
    %119 = vmatpush1.msra.mxu0 0.0
    %120 = vmatprep.subr.mxu0 0.0
    %121 = vmatpush1.msra.mxu0 0.0
    %122 = vmatprep.subr.mxu0 0.0
    %123 = vmatpush1.msra.mxu0 0.0
    %124 = vmatprep.subr.mxu0 0.0
    %125 = vmatpush1.msra.mxu0 0.0
    %126 = vmatprep.subr.mxu0 0.0
    %127 = vmatpush1.msra.mxu0 0.0
    %128 = vmatprep.subr.mxu0 0.0
    %129 = vmatpush1.msra.mxu0 0.0
    %130 = vmatprep.subr.mxu0 0.0
    %131 = vmatpush1.msra.mxu0 0.0
    %132 = vmatprep.subr.mxu0 0.0
    %133 = vmatpush1.msra.mxu0 0.0
    %134 = vmatprep.subr.mxu0 0.0
    %135 = vmatpush1.msra.mxu0 0.0
    %136 = vmatprep.subr.mxu0 0.0
    %137 = vmatpush1.msra.mxu0 0.0
    %138 = vmatprep.subr.mxu0 0.0
    %139 = vmatpush1.msra.mxu0 0.0
    %140 = vmatprep.mubr.f32.mxu0 0.0
    %141 = vmatmul.mubr.f32.gmra.mrb[0].mxu0 %v25
    %v142 = vpop.f32.mrb[0].mxu0
    %v143 = vadd.f32 0.0, %v142
    %v144 = vpop.f32.mrb[0].mxu0
    %145 = vdwg.mxu0
    %v146 = vmax.f32 %v143, 0.0
    %147 = vmatprep.subr.mxu0 0.0
    %148 = vmatpush1.msra.mxu0 %v43
    %149 = vmatprep.subr.mxu0 0.0
    %150 = vmatpush1.msra.mxu0 %v44
    %151 = vmatprep.subr.mxu0 0.0
    %152 = vmatpush1.msra.mxu0 %v45
    %153 = vmatprep.subr.mxu0 0.0
    %154 = vmatpush1.msra.mxu0 %v46
    %155 = vmatprep.subr.mxu0 0.0
    %156 = vmatpush1.msra.mxu0 %v47
    %157 = vmatprep.subr.mxu0 0.0
    %158 = vmatpush1.msra.mxu0 %v48
    %159 = vmatprep.subr.mxu0 0.0
    %160 = vmatpush1.msra.mxu0 %v49
    %161 = vmatprep.subr.mxu0 0.0
    %162 = vmatpush1.msra.mxu0 %v50
    %163 = vmatprep.subr.mxu0 0.0
    %164 = vmatpush1.msra.mxu0 %v51
    %165 = vmatprep.subr.mxu0 0.0
    %166 = vmatpush1.msra.mxu0 %v52
    %167 = vmatprep.subr.mxu0 0.0
    %168 = vmatpush1.msra.mxu0 %v53
    %169 = vmatprep.subr.mxu0 0.0
    %170 = vmatpush1.msra.mxu0 %v54
    %171 = vmatprep.subr.mxu0 0.0
    %172 = vmatpush1.msra.mxu0 %v55
    %173 = vmatprep.subr.mxu0 0.0
    %174 = vmatpush1.msra.mxu0 %v56
    %175 = vmatprep.subr.mxu0 0.0
    %176 = vmatpush1.msra.mxu0 %v57
    %177 = vmatprep.subr.mxu0 0.0
    %178 = vmatpush1.msra.mxu0 %v58
    %179 = vmatprep.subr.mxu0 0.0
    %180 = vmatpush1.msra.mxu0 0.0
    %181 = vmatprep.subr.mxu0 0.0
    %182 = vmatpush1.msra.mxu0 0.0
    %183 = vmatprep.subr.mxu0 0.0
    %184 = vmatpush1.msra.mxu0 0.0
    %185 = vmatprep.subr.mxu0 0.0
    %186 = vmatpush1.msra.mxu0 0.0
    %187 = vmatprep.subr.mxu0 0.0
    %188 = vmatpush1.msra.mxu0 0.0
    %189 = vmatprep.subr.mxu0 0.0
    %190 = vmatpush1.msra.mxu0 0.0
    %191 = vmatprep.subr.mxu0 0.0
    %192 = vmatpush1.msra.mxu0 0.0
    %193 = vmatprep.subr.mxu0 0.0
    %194 = vmatpush1.msra.mxu0 0.0
    %195 = vmatprep.subr.mxu0 0.0
    %196 = vmatpush1.msra.mxu0 0.0
    %197 = vmatprep.subr.mxu0 0.0
    %198 = vmatpush1.msra.mxu0 0.0
    %199 = vmatprep.subr.mxu0 0.0
    %200 = vmatpush1.msra.mxu0 0.0
    %201 = vmatprep.subr.mxu0 0.0
    %202 = vmatpush1.msra.mxu0 0.0
    %203 = vmatprep.subr.mxu0 0.0
    %204 = vmatpush1.msra.mxu0 0.0
    %205 = vmatprep.subr.mxu0 0.0
    %206 = vmatpush1.msra.mxu0 0.0
    %207 = vmatprep.subr.mxu0 0.0
    %208 = vmatpush1.msra.mxu0 0.0
    %209 = vmatprep.subr.mxu0 0.0
    %210 = vmatpush1.msra.mxu0 0.0
    %211 = vmatprep.mubr.f32.mxu0 0.0
    %212 = vmatmul.mubr.f32.gmra.mrb[0].mxu0 %v146
    %v213 = vpop.f32.mrb[0].mxu0
    %v214 = vadd.f32 0.0, %v213
    %v215 = vpop.f32.mrb[0].mxu0
    %216 = vdwg.mxu0
    %v217 = vmax.f32 %v214, 0.0
    %218 = vmatprep.subr.mxu0 0.0
    %219 = vmatpush1.msra.mxu0 %v60
    %220 = vmatprep.subr.mxu0 0.0
    %221 = vmatpush1.msra.mxu0 %v61
    %222 = vmatprep.subr.mxu0 0.0
    %223 = vmatpush1.msra.mxu0 %v62
    %224 = vmatprep.subr.mxu0 0.0
    %225 = vmatpush1.msra.mxu0 %v63
    %226 = vmatprep.subr.mxu0 0.0
    %227 = vmatpush1.msra.mxu0 %v64
    %228 = vmatprep.subr.mxu0 0.0
    %229 = vmatpush1.msra.mxu0 %v65
    %230 = vmatprep.subr.mxu0 0.0
    %231 = vmatpush1.msra.mxu0 %v66
    %232 = vmatprep.subr.mxu0 0.0
    %233 = vmatpush1.msra.mxu0 %v67
    %234 = vmatprep.subr.mxu0 0.0
    %235 = vmatpush1.msra.mxu0 %v68
    %236 = vmatprep.subr.mxu0 0.0
    %237 = vmatpush1.msra.mxu0 %v69
    %238 = vmatprep.subr.mxu0 0.0
    %239 = vmatpush1.msra.mxu0 %v70
    %240 = vmatprep.subr.mxu0 0.0
    %241 = vmatpush1.msra.mxu0 %v71
    %242 = vmatprep.subr.mxu0 0.0
    %243 = vmatpush1.msra.mxu0 %v72
    %244 = vmatprep.subr.mxu0 0.0
    %245 = vmatpush1.msra.mxu0 %v73
    %246 = vmatprep.subr.mxu0 0.0
    %247 = vmatpush1.msra.mxu0 %v74
    %248 = vmatprep.subr.mxu0 0.0
    %249 = vmatpush1.msra.mxu0 %v75
    %250 = vmatprep.subr.mxu0 0.0
    %251 = vmatpush1.msra.mxu0 0.0
    %252 = vmatprep.subr.mxu0 0.0
    %253 = vmatpush1.msra.mxu0 0.0
    %254 = vmatprep.subr.mxu0 0.0
    %255 = vmatpush1.msra.mxu0 0.0
    %256 = vmatprep.subr.mxu0 0.0
    %257 = vmatpush1.msra.mxu0 0.0
    %258 = vmatprep.subr.mxu0 0.0
    %259 = vmatpush1.msra.mxu0 0.0
    %260 = vmatprep.subr.mxu0 0.0
    %261 = vmatpush1.msra.mxu0 0.0
    %262 = vmatprep.subr.mxu0 0.0
    %263 = vmatpush1.msra.mxu0 0.0
    %264 = vmatprep.subr.mxu0 0.0
    %265 = vmatpush1.msra.mxu0 0.0
    %266 = vmatprep.subr.mxu0 0.0
    %267 = vmatpush1.msra.mxu0 0.0
    %268 = vmatprep.subr.mxu0 0.0
    %269 = vmatpush1.msra.mxu0 0.0
    %270 = vmatprep.subr.mxu0 0.0
    %271 = vmatpush1.msra.mxu0 0.0
    %272 = vmatprep.subr.mxu0 0.0
    %273 = vmatpush1.msra.mxu0 0.0
    %274 = vmatprep.subr.mxu0 0.0
    %275 = vmatpush1.msra.mxu0 0.0
    %276 = vmatprep.subr.mxu0 0.0
    %277 = vmatpush1.msra.mxu0 0.0
    %278 = vmatprep.subr.mxu0 0.0
    %279 = vmatpush1.msra.mxu0 0.0
    %280 = vmatprep.subr.mxu0 0.0
    %281 = vmatpush1.msra.mxu0 0.0
    %282 = vmatprep.mubr.f32.mxu0 0.0
    %283 = vmatmul.mubr.f32.gmra.mrb[0].mxu0 %v217
    %v284 = vpop.f32.mrb[0].mxu0
    %v285 = vadd.f32 0.0, %v284
    %v286 = vpop.f32.mrb[0].mxu0
    %287 = vdwg.mxu0
    %v288 = vlaneseq
    %v289 = vand.u32 %v288, 127
    %vm290 = vcmp.lt.s32.totalorder %v289, 3
    %v291 = vsel %vm290, %v285, -1e+30
    %292 = vmax.xlane.f32.xlu0 %v291
    %v293 = vpop.xlane.xlu0 %292
    %v294 = vsub.f32 %v291, %v293
    %v295 = vmul.f32 %v294, 1.442695
    %v296 = vpow.pop %v295
    %297 = vadd.xlane.f32.xlu0 %v296
    %v298 = vpop.xlane.xlu0 %297
    %v299 = vrcp.pop %v298
    %v300 = vmul.f32 1.0, %v299
    %v301 = vmul.f32 %v296, %v300
    %302 = vst [vmem:[%s2] sm:$0xff] %v301
    // Predicated region
    $region14: #{_policy_forward_2d.1} parent=1 // pred_check
      _
    $region15: #{_policy_forward_2d.1} parent=1 // pred_check_branch
      %304 = sbr.rel (0) target = $region17
    $region16: #{_policy_forward_2d.1} parent=1 // pred_region
      _
    $region17: #{_policy_forward_2d.1} parent=1 // pred_fallthru
      _
    // Predicated region
    $region18: #{_policy_forward_2d.1} parent=1 // pred_check
      _
    $region19: #{_policy_forward_2d.1} parent=1 // pred_check_branch
      %306 = sbr.rel (0) target = $region21
    $region20: #{_policy_forward_2d.1} parent=1 // pred_region
      _
    $region21: #{_policy_forward_2d.1} parent=1 // pred_fallthru
      _
    %307 = vsyncpa [#allocation3], 1

</llo_original>
